<compile_context>
chip_gen: v6e
topology: v6e:2x2x1
jax: 0.10.0
libtpu: 0.0.40
codegen_flags: <defaults>
</compile_context>

<pallas_src>
import math

import jax
import jax.numpy as jnp
from jax.experimental import pallas as pl
from jax.experimental.pallas import tpu as pltpu


_TM_CANDIDATES = (16384, 8192, 4096, 2048, 1024, 512, 256, 128, 64, 32, 16, 8)


def _chip_params():
    """Per-generation VMEM budgets (bytes) and MXU-vs-HBM intensity caps."""
    kind = ""
    try:
        kind = jax.devices()[0].device_kind.lower()
    except Exception:
        pass
    if "v7" in kind:
        # 64 MiB VMEM / TC, ~3.2 TB/s HBM / TC, bf16/fp8 MXU (f32 multi-pass).
        p = dict(tile_budget=26 << 20, vmem_limit=48 << 20,
                 f32_cap=48.0, bf16_cap=200.0)
    elif "v6" in kind:
        # 128 MiB VMEM, ~1.4 TB/s HBM, 918 TF/s bf16 MXU.
        p = dict(tile_budget=48 << 20, vmem_limit=64 << 20,
                 f32_cap=96.0, bf16_cap=400.0)
    elif "v5" in kind:
        # 128 MiB VMEM, ~0.82 TB/s HBM, 197 TF/s bf16 MXU (f32 much slower).
        p = dict(tile_budget=48 << 20, vmem_limit=64 << 20,
                 f32_cap=32.0, bf16_cap=160.0)
    else:
        # Unknown / interpret: conservative defaults.
        p = dict(tile_budget=20 << 20, vmem_limit=32 << 20,
                 f32_cap=32.0, bf16_cap=160.0)
    # Refine against the physically reported VMEM capacity when available.
    try:
        cap = int(pltpu.get_tpu_info().vmem_capacity_bytes)
        p["vmem_limit"] = min(p["vmem_limit"], max(8 << 20, cap - (16 << 20)))
        p["tile_budget"] = min(p["tile_budget"],
                               max(4 << 20, p["vmem_limit"] - (6 << 20)))
    except Exception:
        pass
    return p


def _pick_group_factor(T, K, E, x_item, o_item, flop_per_byte_cap):
    """Number of consecutive tokens packed into one kernel row."""
    if T <= 0:
        return 1
    # Lane density target: both contraction width g*K and output width g*E
    # reach one full 128-lane vreg.
    g_target = max(-(-128 // max(K, 1)), -(-128 // max(E, 1)))
    # Keep the packed block-diagonal weight / widths modest.
    g_cap = min(T, max(1, 1024 // max(K, 1)), max(1, 1024 // max(E, 1)))
    # Keep the packed GEMM comfortably HBM-bound on every generation:
    #   arithmetic intensity = 2*g*K*E / (K*x_item + E*o_item)   [flop/byte]
    bytes_per_token = K * x_item + E * o_item
    g_cap = min(g_cap,
                max(1, int(flop_per_byte_cap * bytes_per_token // (2 * K * E))))
    return max(1, min(g_target, g_cap))


def _pick_row_tile(M, C, N, x_item, o_item, w_item, tile_budget):
    """Largest row tile fitting the VMEM budget; prefers an even step count."""
    if M <= 8:
        return max(M, 1)
    row_bytes = 2 * (C * x_item + N * o_item)   # double-buffered in + out
    weight_bytes = C * N * w_item               # constant index_map: one copy
    max_rows = max(8, (tile_budget - weight_bytes) // max(row_bytes, 1))
    cands = [c for c in _TM_CANDIDATES if c <= max_rows and c <= M]
    if not cands:
        return 8

    def even_steps(c):
        s = pl.cdiv(M, c)
        return s >= 2 and s % 2 == 0

    best = cands[0]                 # largest feasible tile
    half = next((c for c in cands if c == best // 2), None)
    # An even number of grid steps balances v7x's two TensorCores (the single
    # "parallel" axis is sharded across them) and keeps the pipeline alive;
    # never shrink the tile by more than 2x for it.
    if not even_steps(best) and half is not None and even_steps(half):
        best = half
    return best


def _router_kernel(x_ref, w_ref, o_ref):
    # x_ref: (tm, C), w_ref: (C, N), o_ref: (tm, N).  f32 accumulation on MXU.
    o_ref[...] = jnp.dot(
        x_ref[...], w_ref[...], preferred_element_type=jnp.float32
    ).astype(o_ref.dtype)


def _packed_matmul(x2d, w_packed, out_dtype, tile_budget, vmem_limit):
    """out2d = x2d @ w_packed via a pipelined, lane-dense Pallas matmul."""
    M, C = x2d.shape
    _, N = w_packed.shape
    x_item = jnp.dtype(x2d.dtype).itemsize
    o_item = jnp.dtype(out_dtype).itemsize
    w_item = jnp.dtype(w_packed.dtype).itemsize

    tm = _pick_row_tile(M, C, N, x_item, o_item, w_item, tile_budget)
    # No input padding: edge-block reads are padded and edge-block writes are
    # masked by Pallas; rows are independent so padded rows stay harmless.
    grid = (pl.cdiv(M, tm),)

    cost = pl.CostEstimate(
        flops=2 * M * C * N,
        transcendentals=0,
        bytes_accessed=M * C * x_item + C * N * w_item + M * N * o_item,
    )

    return pl.pallas_call(
        _router_kernel,
        out_shape=jax.ShapeDtypeStruct((M, N), out_dtype),
        grid=grid,
        in_specs=[
            pl.BlockSpec((tm, C), lambda i: (i, 0)),
            # Tiny packed weight with a constant index_map: fetched once and
            # held VMEM-resident across the whole grid (no re-fetch).
            pl.BlockSpec((C, N), lambda i: (0, 0)),
        ],
        out_specs=pl.BlockSpec((tm, N), lambda i: (i, 0)),
        compiler_params=pltpu.CompilerParams(
            dimension_semantics=("parallel",),
            vmem_limit_bytes=vmem_limit,
        ),
        cost_estimate=cost,
    )(x2d, w_packed)


@jax.jit
def mh_router(x, expert_embedding):
    """out = x @ expert_embedding; x: (..., head_dim), W: (head_dim, E)."""
    *lead, head_dim = x.shape
    k_dim, num_experts = expert_embedding.shape
    assert head_dim == k_dim, "last dim of x must equal head_dim of expert_embedding"

    out_dtype = jnp.promote_types(x.dtype, expert_embedding.dtype)
    # Keep operand dtypes uniform for the in-kernel dot (matches torch promotion).
    if x.dtype != out_dtype:
        x = x.astype(out_dtype)
    if expert_embedding.dtype != out_dtype:
        expert_embedding = expert_embedding.astype(out_dtype)

    T = math.prod(lead)                          # total number of "tokens"
    if T == 0:
        return jnp.zeros((*lead, num_experts), out_dtype)

    params = _chip_params()
    x_item = jnp.dtype(x.dtype).itemsize
    o_item = jnp.dtype(out_dtype).itemsize
    compute_item = max(x_item, jnp.dtype(expert_embedding.dtype).itemsize)
    flop_cap = params["f32_cap"] if compute_item >= 4 else params["bf16_cap"]

    g = _pick_group_factor(T, head_dim, num_experts, x_item, o_item, flop_cap)
    T_main = (T // g) * g
    M = T_main // g
    C = g * head_dim                             # lane-dense contraction width
    N = g * num_experts                          # lane-dense output width

    # Block-diagonal packed weight: token j inside a packed row only touches
    # output columns [j*E, (j+1)*E).  (<= ~128 KiB; rebuilt per call — cheap.)
    # TODO(synk): cache/hoist w_packed if the caller re-invokes with the same weights.
    if g > 1:
        w_packed = jnp.kron(jnp.eye(g, dtype=expert_embedding.dtype),
                            expert_embedding)
    else:
        w_packed = expert_embedding

    x_tok = x.reshape(T, head_dim)

    if T_main == T:
        # Free contiguous regrouping: g consecutive tokens share one row.
        out2d = _packed_matmul(x_tok.reshape(M, C), w_packed, out_dtype,
                               params["tile_budget"], params["vmem_limit"])
        out_tok = out2d.reshape(T, num_experts)
    else:
        # g does not divide T: keep the lane-dense kernel on the main prefix
        # and route the (< g) leftover tokens through a tiny plain matmul
        # instead of padding the whole tensor (extra HBM pass) or collapsing
        # to a lane-sparse g=1 kernel.
        out_main = _packed_matmul(x_tok[:T_main].reshape(M, C), w_packed,
                                  out_dtype, params["tile_budget"],
                                  params["vmem_limit"])
        out_main = out_main.reshape(T_main, num_experts)
        out_tail = jnp.dot(x_tok[T_main:], expert_embedding,
                           preferred_element_type=jnp.float32).astype(out_dtype)
        out_tok = jnp.concatenate([out_main, out_tail], axis=0)

    return out_tok.reshape(*lead, num_experts)


if __name__ == "__main__":
    # Small shapes consistent with MH-MoE routing:
    batch, seq = 2, 8
    hidden_dim, num_heads, num_experts = 32, 4, 4
    head_dim = hidden_dim // num_heads  # = 8

    key = jax.random.PRNGKey(0)
    kx, kw, k2, k3 = jax.random.split(key, 4)

    # Deterministic "parameter" init mirroring torch.randn(head_dim, num_experts)
    expert_embedding = jax.random.normal(kw, (head_dim, num_experts), jnp.float32)

    # 1) Main case: input tokens split per head -> (batch, seq, num_heads, head_dim)
    x = jax.random.normal(kx, (batch, seq, num_heads, head_dim), jnp.float32)
    out = mh_router(x, expert_embedding)
    jax.block_until_ready(out)
    ref = jnp.matmul(x, expert_embedding)
    assert out.shape == (batch, seq, num_heads, num_experts)
    assert jnp.allclose(out, ref, atol=1e-4, rtol=1e-4), float(
        jnp.max(jnp.abs(out - ref)))

    # 2) Awkward token count (group factor does not divide T -> tail path).
    x2 = jax.random.normal(k2, (5, 10, head_dim), jnp.float32)
    out2 = mh_router(x2, expert_embedding)
    jax.block_until_ready(out2)
    ref2 = jnp.matmul(x2, expert_embedding)
    assert out2.shape == (5, 10, num_experts)
    assert jnp.allclose(out2, ref2, atol=1e-4, rtol=1e-4), float(
        jnp.max(jnp.abs(out2 - ref2)))

    # 3) Token count forcing a partial last grid block (edge-block masking).
    x3 = jax.random.normal(k3, (2, 146, head_dim), jnp.float32)
    out3 = mh_router(x3, expert_embedding)
    jax.block_until_ready(out3)
    ref3 = jnp.matmul(x3, expert_embedding)
    assert out3.shape == (2, 146, num_experts)
    assert jnp.allclose(out3, ref3, atol=1e-4, rtol=1e-4), float(
        jnp.max(jnp.abs(out3 - ref3)))

    print("KERNEL_OK")
</pallas_src>

<mosaic_0001>
module attributes {stable_mosaic.version = 11 : i64} {
  func.func @_router_kernel(%arg0: i32, %arg1: memref<2x192xf32, #tpu.memory_space<vmem>>, %arg2: memref<192x96xf32, #tpu.memory_space<vmem>>, %arg3: memref<2x96xf32, #tpu.memory_space<vmem>>) attributes {dimension_semantics = [#tpu.dimension_semantics<parallel>], iteration_bounds = array<i64: 1>, scalar_prefetch = 0 : i64, scratch_operands = 0 : i64, tpu.core_type = #tpu.core_type<tc>, window_params = [{transform_indices = @transform_0, window_bounds = array<i64: 2, 192>}, {pipeline_mode = #tpu.pipeline_mode<synchronous>, transform_indices = @transform_1, window_bounds = array<i64: 192, 96>}, {transform_indices = @transform_2, window_bounds = array<i64: 2, 96>}]} {
    %c0 = arith.constant 0 : index
    %c0_0 = arith.constant 0 : index
    %0 = vector.load %arg1[%c0, %c0_0] : memref<2x192xf32, #tpu.memory_space<vmem>>, vector<2x192xf32>
    %c0_1 = arith.constant 0 : index
    %c0_2 = arith.constant 0 : index
    %1 = vector.load %arg2[%c0_1, %c0_2] : memref<192x96xf32, #tpu.memory_space<vmem>>, vector<192x96xf32>
    %cst = arith.constant dense<0.000000e+00> : vector<2x96xf32>
    %2 = tpu.matmul %0, %1, %cst {dimension_numbers = #tpu.dot_dimension_numbers<[1], [0], [0], [1], [0, 0, 1, 1], [], []>} : vector<2x192xf32>, vector<192x96xf32>, vector<2x96xf32> -> vector<2x96xf32>
    %c0_3 = arith.constant 0 : index
    %c0_4 = arith.constant 0 : index
    %3 = vector.load %arg3[%c0_3, %c0_4] : memref<2x96xf32, #tpu.memory_space<vmem>>, vector<2x96xf32>
    tpu.vector_store %arg3[%c0_3, %c0_4], %2 {strides = array<i32>} : memref<2x96xf32, #tpu.memory_space<vmem>>, vector<2x96xf32>,
    return
  }
  func.func @transform_0(%arg0: i32) -> (i32, i32) {
    %c0_i32 = arith.constant 0 : i32
    %c0_i32_0 = arith.constant 0 : i32
    return %arg0, %c0_i32 : i32, i32
  }
  func.func @transform_1(%arg0: i32) -> (i32, i32) {
    %c0_i32 = arith.constant 0 : i32
    %c0_i32_0 = arith.constant 0 : i32
    %c0_i32_1 = arith.constant 0 : i32
    return %c0_i32, %c0_i32_0 : i32, i32
  }
  func.func @transform_2(%arg0: i32) -> (i32, i32) {
    %c0_i32 = arith.constant 0 : i32
    %c0_i32_0 = arith.constant 0 : i32
    return %arg0, %c0_i32 : i32, i32
  }
}

</mosaic_0001>

<llo_original>
// kernel: mh_router.1
$region0: #{mh_router.1}
  #allocation0 [shape = 'u32[]', space=smem, size = 0x4, offset = 0x4, fixed_abs, tag = 'smem constant byte address 0x4 - core index']
  #allocation1 [shape = 'u32[144,128]{1,0:T(1,128)}', space=vmem, size = 0x12000, scoped, tag = 'internal scratch']
  %s0 = inlined_call_operand.vmem [shape: f32[2,192], index: 0, kind: input, shape index: {}]
  %s1 = inlined_call_operand.vmem [shape: f32[192,96], index: 1, kind: input, shape index: {}]
  %s2 = inlined_call_operand.vmem [shape: f32[2,96], index: 2, kind: output, shape index: {}]
  %s3 = sld [smem:[#allocation0]]
  $region18: #{mh_router.1} parent=0
    _
  %s5 = ssub.s32 1, %s3
  %s6 = scalar_select 0, %s5, %s3
  // Predicated region
  $region2: #{mh_router.1} parent=0 // pred_check
    _
  $region3: #{mh_router.1} parent=0 // pred_check_branch
    %8 = sbr.rel (0) target = $region5
  $region4: #{mh_router.1} parent=0 // pred_region
    _
  $region5: #{mh_router.1} parent=0 // pred_fallthru
    _
  // Predicated region
  $region6: #{mh_router.1} parent=0 // pred_check
    _
  $region7: #{mh_router.1} parent=0 // pred_check_branch
    %10 = sbr.rel (0) target = $region9
  $region8: #{mh_router.1} parent=0 // pred_region
    _
  $region9: #{mh_router.1} parent=0 // pred_fallthru
    _
  %v11 = vld [vmem:[%s0] sm:$0xf]
  %v12 = vld [vmem:[%s1] sm:$0xff]
  %v13 = vld [vmem:[%s1 + $0x8] sm:$0xff]
  %v14 = vld [vmem:[%s1 + $0x10] sm:$0xff]
  %v15 = vld [vmem:[%s1 + $0x18] sm:$0xff]
  %v16 = vld [vmem:[%s1 + $0x20] sm:$0xff]
  %v17 = vld [vmem:[%s1 + $0x28] sm:$0xff]
  %v18 = vld [vmem:[%s1 + $0x30] sm:$0xff]
  %v19 = vld [vmem:[%s1 + $0x38] sm:$0xff]
  %v20 = vld [vmem:[%s1 + $0x40] sm:$0xff]
  %v21 = vld [vmem:[%s1 + $0x48] sm:$0xff]
  %v22 = vld [vmem:[%s1 + $0x50] sm:$0xff]
  %v23 = vld [vmem:[%s1 + $0x58] sm:$0xff]
  %v24 = vld [vmem:[%s1 + $0x60] sm:$0xff]
  %v25 = vld [vmem:[%s1 + $0x68] sm:$0xff]
  %v26 = vld [vmem:[%s1 + $0x70] sm:$0xff]
  %v27 = vld [vmem:[%s1 + $0x78] sm:$0xff]
  %v28 = vld [vmem:[%s1 + $0x80] sm:$0xff]
  %v29 = vld [vmem:[%s1 + $0x88] sm:$0xff]
  %v30 = vld [vmem:[%s1 + $0x90] sm:$0xff]
  %v31 = vld [vmem:[%s1 + $0x98] sm:$0xff]
  %v32 = vld [vmem:[%s1 + $0xa0] sm:$0xff]
  %v33 = vld [vmem:[%s1 + $0xa8] sm:$0xff]
  %v34 = vld [vmem:[%s1 + $0xb0] sm:$0xff]
  %v35 = vld [vmem:[%s1 + $0xb8] sm:$0xff]
  %v38 = vunpack.c.l.s4 1983009808
  %v39 = vunpack.c.0.s8 %v38
  %v40 = vlaneseq
  %v41 = vshrl.u32 %v40, 7
  %v42 = vsub.s32 %v39, %v41
  %v43 = vrot.slane %v11, %v42
  %v44 = vcombine.high %v43, %v43
  %vm46 = vcmask 523264
  %v47 = vsel %vm46, %v44, 0
  %49 = vmatprep.subr.mxu0 0.0
  %50 = vmatpush1.msra.mxu0 %v27
  %51 = vmatprep.subr.mxu0 0.0
  %52 = vmatpush1.msra.mxu0 %v26
  %53 = vmatprep.subr.mxu0 0.0
  %54 = vmatpush1.msra.mxu0 %v25
  %55 = vmatprep.subr.mxu0 0.0
  %56 = vmatpush1.msra.mxu0 %v24
  %57 = vmatprep.subr.mxu0 0.0
  %58 = vmatpush1.msra.mxu0 %v23
  %59 = vmatprep.subr.mxu0 0.0
  %60 = vmatpush1.msra.mxu0 %v22
  %61 = vmatprep.subr.mxu0 0.0
  %62 = vmatpush1.msra.mxu0 %v21
  %63 = vmatprep.subr.mxu0 0.0
  %64 = vmatpush1.msra.mxu0 %v20
  %65 = vmatprep.subr.mxu0 0.0
  %66 = vmatpush1.msra.mxu0 %v19
  %67 = vmatprep.subr.mxu0 0.0
  %68 = vmatpush1.msra.mxu0 %v18
  %69 = vmatprep.subr.mxu0 0.0
  %70 = vmatpush1.msra.mxu0 %v17
  %71 = vmatprep.subr.mxu0 0.0
  %72 = vmatpush1.msra.mxu0 %v16
  %73 = vmatprep.subr.mxu0 0.0
  %74 = vmatpush1.msra.mxu0 %v15
  %75 = vmatprep.subr.mxu0 0.0
  %76 = vmatpush1.msra.mxu0 %v14
  %77 = vmatprep.subr.mxu0 0.0
  %78 = vmatpush1.msra.mxu0 %v13
  %79 = vmatprep.subr.mxu0 0.0
  %80 = vmatpush1.msra.mxu0 %v12
  %81 = vmatprep.subr.mxu0 0.0
  %82 = vmatpush2.msra.mxu0 0.0
  %83 = vmatprep.subr.mxu0 0.0
  %84 = vmatpush2.msra.mxu0 0.0
  %85 = vmatprep.subr.mxu0 0.0
  %86 = vmatpush2.msra.mxu0 0.0
  %87 = vmatprep.subr.mxu0 0.0
  %88 = vmatpush2.msra.mxu0 0.0
  %89 = vmatprep.subr.mxu0 0.0
  %90 = vmatpush2.msra.mxu0 0.0
  %91 = vmatprep.subr.mxu0 0.0
  %92 = vmatpush2.msra.mxu0 0.0
  %93 = vmatprep.subr.mxu0 0.0
  %94 = vmatpush2.msra.mxu0 0.0
  %95 = vmatprep.subr.mxu0 0.0
  %96 = vmatpush2.msra.mxu0 0.0
  %97 = vmatprep.subr.mxu0 0.0
  %98 = vmatpush2.msra.mxu0 %v35
  %99 = vmatprep.subr.mxu0 0.0
  %100 = vmatpush2.msra.mxu0 %v34
  %101 = vmatprep.subr.mxu0 0.0
  %102 = vmatpush2.msra.mxu0 %v33
  %103 = vmatprep.subr.mxu0 0.0
  %104 = vmatpush2.msra.mxu0 %v32
  %105 = vmatprep.subr.mxu0 0.0
  %106 = vmatpush2.msra.mxu0 %v31
  %107 = vmatprep.subr.mxu0 0.0
  %108 = vmatpush2.msra.mxu0 %v30
  %109 = vmatprep.subr.mxu0 0.0
  %110 = vmatpush2.msra.mxu0 %v29
  %111 = vmatprep.subr.mxu0 0.0
  %112 = vmatpush2.msra.mxu0 %v28
  %113 = vmatprep.mubr.f32.mxu0 %v47
  %114 = vmatmul.mubr.f32.gmra.mxu0 %v43
  %v115 = vpop.f32.mrf.mxu0
  %v116 = vadd.f32 0.0, %v115
  %v117 = vpop.f32.mrf.mxu0
  %118 = vdwg.mxu0
  %vm119 = vcmask 779264
  %120 = vst.msk [vmem:[%s2] sm:$0x3] %vm119, %v116
  // Predicated region
  $region10: #{mh_router.1} parent=0 // pred_check
    _
  $region11: #{mh_router.1} parent=0 // pred_check_branch
    %122 = sbr.rel (0) target = $region13
  $region12: #{mh_router.1} parent=0 // pred_region
    _
  $region13: #{mh_router.1} parent=0 // pred_fallthru
    _
  // Predicated region
  $region14: #{mh_router.1} parent=0 // pred_check
    _
  $region15: #{mh_router.1} parent=0 // pred_check_branch
    %124 = sbr.rel (0) target = $region17
  $region16: #{mh_router.1} parent=0 // pred_region
    _
  $region17: #{mh_router.1} parent=0 // pred_fallthru
    _

</llo_original>
